<compile_context>
chip_gen: v6e
topology: v6e:2x2x1
jax: 0.10.0
libtpu: 0.0.40
codegen_flags: <defaults>
</compile_context>

<pallas_src>
import jax
import jax.numpy as jnp
import numpy as np
from jax.experimental import pallas as pl
from jax.experimental.pallas import tpu as pltpu


def _round_up(x, m):
    return ((x + m - 1) // m) * m


def jointqn_kernel(s0_ref, s2_ref, w1a_ref, w1b_ref, b1_ref,
                   w2_ref, b2_ref, w3_ref, b3_ref, q_ref):
    cdt = w1a_ref.dtype  # MXU input dtype (f32 or bf16); accum/epilogue in f32
    s0 = s0_ref[...].astype(cdt)  # in-kernel cast: inputs stay f32 in HBM
    s2 = s2_ref[...].astype(cdt)

    # fc1: contraction split over the two state halves (replaces torch.cat).
    h1 = (jnp.dot(s0, w1a_ref[...], preferred_element_type=jnp.float32)
          + jnp.dot(s2, w1b_ref[...], preferred_element_type=jnp.float32)
          + b1_ref[...])
    h1 = jnp.maximum(h1, 0.0).astype(cdt)      # f32 epilogue; cast only for MXU

    # fc2 + relu
    h2 = jnp.dot(h1, w2_ref[...], preferred_element_type=jnp.float32) + b2_ref[...]
    h2 = jnp.maximum(h2, 0.0).astype(cdt)

    # out (true O-wide result, no lane padding)
    q = jnp.dot(h2, w3_ref[...], preferred_element_type=jnp.float32) + b3_ref[...]
    q_ref[...] = q.astype(q_ref.dtype)


def prepare_params(params, *, compute_dtype=jnp.float32):
    """One-time padding/casting of JointQNetwork params for the kernel.

    params = (w1, b1, w2, b2, w3, b3) with weights stored (in_features,
    out_features) and 1-D biases.  Call ONCE (outside the per-step path).
    """
    w1, b1, w2, b2, w3, b3 = params
    two_sd, H = w1.shape
    state_dim = two_sd // 2
    O = w3.shape[1]
    Hp = _round_up(H, 128)

    def padw(a, rows, cols):
        return jnp.pad(a, ((0, rows - a.shape[0]), (0, cols - a.shape[1])))

    w1a = padw(w1[:state_dim], state_dim, Hp).astype(compute_dtype)
    w1b = padw(w1[state_dim:], state_dim, Hp).astype(compute_dtype)
    b1p = padw(b1.reshape(1, -1), 1, Hp).astype(jnp.float32)
    w2p = padw(w2, Hp, Hp).astype(compute_dtype)
    b2p = padw(b2.reshape(1, -1), 1, Hp).astype(jnp.float32)
    w3p = padw(w3, Hp, O).astype(compute_dtype)          # output dim NOT padded
    b3p = b3.reshape(1, -1).astype(jnp.float32)
    return (w1a, w1b, b1p, w2p, b2p, w3p, b3p)


def _pick_batch_tile(B, batch_tile):
    bt = min(max(8, (batch_tile // 8) * 8), _round_up(B, 8))
    if B > 64:
        # v7x megacore: guarantee >= 2 steps on the "parallel" batch axis.
        bt = min(bt, _round_up(pl.cdiv(B, 2), 8))
    return max(8, bt)


def joint_q_network(s0, s2, prepared, action_dim, *, batch_tile=1024):
    """Forward pass equivalent to JointQNetwork.forward(s0, s2).

    `prepared` comes from prepare_params() (pre-padded / pre-cast weights).
    """
    w1a, w1b, b1p, w2p, b2p, w3p, b3p = prepared
    B, state_dim = s0.shape
    Hp = w2p.shape[0]
    O = w3p.shape[1]
    assert O == action_dim * action_dim

    bt = _pick_batch_tile(B, batch_tile)
    grid = (pl.cdiv(B, bt),)

    w_isz = jnp.dtype(w1a.dtype).itemsize
    cost = pl.CostEstimate(
        flops=2 * grid[0] * bt * (2 * state_dim * Hp + Hp * Hp + Hp * O),
        transcendentals=0,
        bytes_accessed=(2 * B * state_dim * s0.dtype.itemsize        # s0, s2
                        + (2 * state_dim * Hp + Hp * Hp + Hp * O) * w_isz
                        + (2 * Hp + O) * 4                            # biases
                        + B * O * 4),                                 # output
    )

    bcast = lambda i: (0, 0)  # weights/biases are index-invariant (no re-DMA)
    q_flat = pl.pallas_call(
        jointqn_kernel,
        out_shape=jax.ShapeDtypeStruct((B, O), jnp.float32),
        grid=grid,
        in_specs=[
            pl.BlockSpec((bt, state_dim), lambda i: (i, 0)),
            pl.BlockSpec((bt, state_dim), lambda i: (i, 0)),
            pl.BlockSpec((state_dim, Hp), bcast),
            pl.BlockSpec((state_dim, Hp), bcast),
            pl.BlockSpec((1, Hp), bcast),
            pl.BlockSpec((Hp, Hp), bcast),
            pl.BlockSpec((1, Hp), bcast),
            pl.BlockSpec((Hp, O), bcast),
            pl.BlockSpec((1, O), bcast),
        ],
        out_specs=pl.BlockSpec((bt, O), lambda i: (i, 0)),
        compiler_params=pltpu.CompilerParams(
            dimension_semantics=("parallel",)),
        cost_estimate=cost,
    )(s0, s2, w1a, w1b, b1p, w2p, b2p, w3p, b3p)

    # q.view(-1, action_dim, action_dim); no padding to slice off.
    return q_flat.reshape(-1, action_dim, action_dim)


def init_params(key, state_dim, hidden_dim, action_dim):
    """nn.Linear-style init U[-1/sqrt(fan_in), 1/sqrt(fan_in)];
    weights stored (in_features, out_features), biases 1-D."""
    def linear(k, fan_in, fan_out):
        kw, kb = jax.random.split(k)
        bound = float(fan_in) ** -0.5
        w = jax.random.uniform(kw, (fan_in, fan_out), jnp.float32, -bound, bound)
        b = jax.random.uniform(kb, (fan_out,), jnp.float32, -bound, bound)
        return w, b

    k1, k2, k3 = jax.random.split(key, 3)
    w1, b1 = linear(k1, 2 * state_dim, hidden_dim)
    w2, b2 = linear(k2, hidden_dim, hidden_dim)
    w3, b3 = linear(k3, hidden_dim, action_dim * action_dim)
    return (w1, b1, w2, b2, w3, b3)


def reference_forward(s0, s2, params, action_dim):
    """High-precision numpy reference (avoids TPU matmul-precision ambiguity)."""
    w1, b1, w2, b2, w3, b3 = (np.asarray(a, np.float64) for a in params)
    x = np.concatenate([np.asarray(s0, np.float64),
                        np.asarray(s2, np.float64)], axis=-1)
    x = np.maximum(x @ w1 + b1, 0.0)
    x = np.maximum(x @ w2 + b2, 0.0)
    q = x @ w3 + b3
    return q.reshape(-1, action_dim, action_dim)


if __name__ == "__main__":
    state_dim = 16
    hidden_dim = 32
    action_dim = 4
    batch = 8

    key = jax.random.PRNGKey(0)
    kp, ks0, ks2 = jax.random.split(key, 3)

    params = init_params(kp, state_dim, hidden_dim, action_dim)
    s0 = jax.random.normal(ks0, (batch, state_dim), jnp.float32)
    s2 = jax.random.normal(ks2, (batch, state_dim), jnp.float32)

    q_ref = reference_forward(s0, s2, params, action_dim)

    # f32 MXU-input path (default): near-exact vs reference.
    prep_f32 = prepare_params(params, compute_dtype=jnp.float32)
    q = jax.block_until_ready(joint_q_network(s0, s2, prep_f32, action_dim))
    assert q.shape == (batch, action_dim, action_dim)
    assert np.allclose(np.asarray(q, np.float64), q_ref, atol=1e-4, rtol=1e-4)

    # bf16 MXU-input path (bandwidth win on all generations, incl. v5e);
    # f32 accumulation / bias / relu epilogue.
    prep_bf16 = prepare_params(params, compute_dtype=jnp.bfloat16)
    q_bf16 = jax.block_until_ready(joint_q_network(s0, s2, prep_bf16, action_dim))
    assert np.allclose(np.asarray(q_bf16, np.float64), q_ref, atol=5e-2, rtol=5e-2)

    print("KERNEL_OK")
</pallas_src>

<mosaic_0001>
module attributes {stable_mosaic.version = 11 : i64} {
  func.func @jointqn_kernel(%arg0: i32, %arg1: memref<8x16xf32, #tpu.memory_space<vmem>>, %arg2: memref<8x16xf32, #tpu.memory_space<vmem>>, %arg3: memref<16x128xf32, #tpu.memory_space<vmem>>, %arg4: memref<16x128xf32, #tpu.memory_space<vmem>>, %arg5: memref<1x128xf32, #tpu.memory_space<vmem>>, %arg6: memref<128x128xf32, #tpu.memory_space<vmem>>, %arg7: memref<1x128xf32, #tpu.memory_space<vmem>>, %arg8: memref<128x16xf32, #tpu.memory_space<vmem>>, %arg9: memref<1x16xf32, #tpu.memory_space<vmem>>, %arg10: memref<8x16xf32, #tpu.memory_space<vmem>>) attributes {dimension_semantics = [#tpu.dimension_semantics<parallel>], iteration_bounds = array<i64: 1>, scalar_prefetch = 0 : i64, scratch_operands = 0 : i64, tpu.core_type = #tpu.core_type<tc>, window_params = [{transform_indices = @transform_0, window_bounds = array<i64: 8, 16>}, {transform_indices = @transform_1, window_bounds = array<i64: 8, 16>}, {pipeline_mode = #tpu.pipeline_mode<synchronous>, transform_indices = @transform_2, window_bounds = array<i64: 16, 128>}, {pipeline_mode = #tpu.pipeline_mode<synchronous>, transform_indices = @transform_3, window_bounds = array<i64: 16, 128>}, {pipeline_mode = #tpu.pipeline_mode<synchronous>, transform_indices = @transform_4, window_bounds = array<i64: 1, 128>}, {pipeline_mode = #tpu.pipeline_mode<synchronous>, transform_indices = @transform_5, window_bounds = array<i64: 128, 128>}, {pipeline_mode = #tpu.pipeline_mode<synchronous>, transform_indices = @transform_6, window_bounds = array<i64: 1, 128>}, {pipeline_mode = #tpu.pipeline_mode<synchronous>, transform_indices = @transform_7, window_bounds = array<i64: 128, 16>}, {pipeline_mode = #tpu.pipeline_mode<synchronous>, transform_indices = @transform_8, window_bounds = array<i64: 1, 16>}, {transform_indices = @transform_9, window_bounds = array<i64: 8, 16>}]} {
    %c0 = arith.constant 0 : index
    %c0_0 = arith.constant 0 : index
    %0 = vector.load %arg1[%c0, %c0_0] : memref<8x16xf32, #tpu.memory_space<vmem>>, vector<8x16xf32>
    %c0_1 = arith.constant 0 : index
    %c0_2 = arith.constant 0 : index
    %1 = vector.load %arg2[%c0_1, %c0_2] : memref<8x16xf32, #tpu.memory_space<vmem>>, vector<8x16xf32>
    %c0_3 = arith.constant 0 : index
    %c0_4 = arith.constant 0 : index
    %2 = vector.load %arg3[%c0_3, %c0_4] : memref<16x128xf32, #tpu.memory_space<vmem>>, vector<16x128xf32>
    %cst = arith.constant dense<0.000000e+00> : vector<8x128xf32>
    %3 = tpu.matmul %0, %2, %cst {dimension_numbers = #tpu.dot_dimension_numbers<[1], [0], [0], [1], [0, 0, 1, 1], [], []>} : vector<8x16xf32>, vector<16x128xf32>, vector<8x128xf32> -> vector<8x128xf32>
    %c0_5 = arith.constant 0 : index
    %c0_6 = arith.constant 0 : index
    %4 = vector.load %arg4[%c0_5, %c0_6] : memref<16x128xf32, #tpu.memory_space<vmem>>, vector<16x128xf32>
    %cst_7 = arith.constant dense<0.000000e+00> : vector<8x128xf32>
    %5 = tpu.matmul %1, %4, %cst_7 {dimension_numbers = #tpu.dot_dimension_numbers<[1], [0], [0], [1], [0, 0, 1, 1], [], []>} : vector<8x16xf32>, vector<16x128xf32>, vector<8x128xf32> -> vector<8x128xf32>
    %6 = arith.addf %3, %5 : vector<8x128xf32>
    %c0_8 = arith.constant 0 : index
    %c0_9 = arith.constant 0 : index
    %7 = vector.load %arg5[%c0_8, %c0_9] : memref<1x128xf32, #tpu.memory_space<vmem>>, vector<1x128xf32>
    %8 = vector.broadcast %7 : vector<1x128xf32> to vector<8x128xf32>
    %9 = arith.addf %6, %8 : vector<8x128xf32>
    %cst_10 = arith.constant 0.000000e+00 : f32
    %10 = vector.broadcast %cst_10 : f32 to vector<8x128xf32>
    %11 = arith.maximumf %9, %10 : vector<8x128xf32>
    %c0_11 = arith.constant 0 : index
    %c0_12 = arith.constant 0 : index
    %12 = vector.load %arg6[%c0_11, %c0_12] : memref<128x128xf32, #tpu.memory_space<vmem>>, vector<128x128xf32>
    %cst_13 = arith.constant dense<0.000000e+00> : vector<8x128xf32>
    %13 = tpu.matmul %11, %12, %cst_13 {dimension_numbers = #tpu.dot_dimension_numbers<[1], [0], [0], [1], [0, 0, 1, 1], [], []>} : vector<8x128xf32>, vector<128x128xf32>, vector<8x128xf32> -> vector<8x128xf32>
    %c0_14 = arith.constant 0 : index
    %c0_15 = arith.constant 0 : index
    %14 = vector.load %arg7[%c0_14, %c0_15] : memref<1x128xf32, #tpu.memory_space<vmem>>, vector<1x128xf32>
    %15 = vector.broadcast %14 : vector<1x128xf32> to vector<8x128xf32>
    %16 = arith.addf %13, %15 : vector<8x128xf32>
    %cst_16 = arith.constant 0.000000e+00 : f32
    %17 = vector.broadcast %cst_16 : f32 to vector<8x128xf32>
    %18 = arith.maximumf %16, %17 : vector<8x128xf32>
    %c0_17 = arith.constant 0 : index
    %c0_18 = arith.constant 0 : index
    %19 = vector.load %arg8[%c0_17, %c0_18] : memref<128x16xf32, #tpu.memory_space<vmem>>, vector<128x16xf32>
    %cst_19 = arith.constant dense<0.000000e+00> : vector<8x16xf32>
    %20 = tpu.matmul %18, %19, %cst_19 {dimension_numbers = #tpu.dot_dimension_numbers<[1], [0], [0], [1], [0, 0, 1, 1], [], []>} : vector<8x128xf32>, vector<128x16xf32>, vector<8x16xf32> -> vector<8x16xf32>
    %c0_20 = arith.constant 0 : index
    %c0_21 = arith.constant 0 : index
    %21 = vector.load %arg9[%c0_20, %c0_21] : memref<1x16xf32, #tpu.memory_space<vmem>>, vector<1x16xf32>
    %22 = vector.broadcast %21 : vector<1x16xf32> to vector<8x16xf32>
    %23 = arith.addf %20, %22 : vector<8x16xf32>
    %c0_22 = arith.constant 0 : index
    %c0_23 = arith.constant 0 : index
    %24 = vector.load %arg10[%c0_22, %c0_23] : memref<8x16xf32, #tpu.memory_space<vmem>>, vector<8x16xf32>
    tpu.vector_store %arg10[%c0_22, %c0_23], %23 {strides = array<i32>} : memref<8x16xf32, #tpu.memory_space<vmem>>, vector<8x16xf32>,
    return
  }
  func.func @transform_0(%arg0: i32) -> (i32, i32) {
    %c0_i32 = arith.constant 0 : i32
    %c0_i32_0 = arith.constant 0 : i32
    return %arg0, %c0_i32 : i32, i32
  }
  func.func @transform_1(%arg0: i32) -> (i32, i32) {
    %c0_i32 = arith.constant 0 : i32
    %c0_i32_0 = arith.constant 0 : i32
    return %arg0, %c0_i32 : i32, i32
  }
  func.func @transform_2(%arg0: i32) -> (i32, i32) {
    %c0_i32 = arith.constant 0 : i32
    %c0_i32_0 = arith.constant 0 : i32
    %c0_i32_1 = arith.constant 0 : i32
    return %c0_i32, %c0_i32_0 : i32, i32
  }
  func.func @transform_3(%arg0: i32) -> (i32, i32) {
    %c0_i32 = arith.constant 0 : i32
    %c0_i32_0 = arith.constant 0 : i32
    %c0_i32_1 = arith.constant 0 : i32
    return %c0_i32, %c0_i32_0 : i32, i32
  }
  func.func @transform_4(%arg0: i32) -> (i32, i32) {
    %c0_i32 = arith.constant 0 : i32
    %c0_i32_0 = arith.constant 0 : i32
    %c0_i32_1 = arith.constant 0 : i32
    return %c0_i32, %c0_i32_0 : i32, i32
  }
  func.func @transform_5(%arg0: i32) -> (i32, i32) {
    %c0_i32 = arith.constant 0 : i32
    %c0_i32_0 = arith.constant 0 : i32
    %c0_i32_1 = arith.constant 0 : i32
    return %c0_i32, %c0_i32_0 : i32, i32
  }
  func.func @transform_6(%arg0: i32) -> (i32, i32) {
    %c0_i32 = arith.constant 0 : i32
    %c0_i32_0 = arith.constant 0 : i32
    %c0_i32_1 = arith.constant 0 : i32
    return %c0_i32, %c0_i32_0 : i32, i32
  }
  func.func @transform_7(%arg0: i32) -> (i32, i32) {
    %c0_i32 = arith.constant 0 : i32
    %c0_i32_0 = arith.constant 0 : i32
    %c0_i32_1 = arith.constant 0 : i32
    return %c0_i32, %c0_i32_0 : i32, i32
  }
  func.func @transform_8(%arg0: i32) -> (i32, i32) {
    %c0_i32 = arith.constant 0 : i32
    %c0_i32_0 = arith.constant 0 : i32
    %c0_i32_1 = arith.constant 0 : i32
    return %c0_i32, %c0_i32_0 : i32, i32
  }
  func.func @transform_9(%arg0: i32) -> (i32, i32) {
    %c0_i32 = arith.constant 0 : i32
    %c0_i32_0 = arith.constant 0 : i32
    return %arg0, %c0_i32 : i32, i32
  }
}

</mosaic_0001>

<llo_original>
// kernel: tpu_custom_call.1
$region0: #{tpu_custom_call.1}
  #allocation0 [shape = 'u32[]', space=smem, size = 0x4, offset = 0x4, fixed_abs, tag = 'smem constant byte address 0x4 - core index']
  #allocation1 [shape = 'u32[144,128]{1,0:T(1,128)}', space=vmem, size = 0x12000, scoped, tag = 'internal scratch']
  %s0 = inlined_call_operand.vmem [shape: f32[8,16], index: 0, kind: input, shape index: {}]
  %s1 = inlined_call_operand.hbm [shape: f32[8,16], index: 1, kind: input, shape index: {}]
  %s2 = inlined_call_operand.vmem [shape: f32[16,128], index: 2, kind: input, shape index: {}]
  %s3 = inlined_call_operand.hbm [shape: f32[16,128], index: 3, kind: input, shape index: {}]
  %s4 = inlined_call_operand.vmem [shape: f32[1,128], index: 4, kind: input, shape index: {}]
  %s5 = inlined_call_operand.vmem [shape: f32[128,128], index: 5, kind: input, shape index: {}]
  %s6 = inlined_call_operand.vmem [shape: f32[1,128], index: 6, kind: input, shape index: {}]
  %s7 = inlined_call_operand.vmem [shape: f32[128,16], index: 7, kind: input, shape index: {}]
  %s8 = inlined_call_operand.vmem [shape: f32[1,16], index: 8, kind: input, shape index: {}]
  %s9 = inlined_call_operand.hbm [shape: f32[8,16], index: 9, kind: output, shape index: {}]
  %s10 = sld [smem:[#allocation0]]
  $region54: #{tpu_custom_call.1} parent=0
    _
  %s12 = ssub.s32 1, %s10
  %s13 = scalar_select 0, %s12, %s10
  $region1: #{tpu_custom_call.1} parent=0
    #allocation2 [shape = 'u8[4096]{0}', space=vmem, size = 0x1000, scoped, tag = 'input window, operand 1, single buffered']
    #allocation3 [shape = 's32[1]{0}', space=sflag, size = 0x4, scoped, tag = 'scoped memory for tpu_custom_call.1']
    #allocation4 [shape = 's32[1]{0}', space=sflag, size = 0x4, scoped, tag = 'scoped memory for tpu_custom_call.1']
    #allocation5 [shape = 'u8[8192]{0}', space=vmem, size = 0x2000, scoped, tag = 'input window, operand 3, single buffered']
    #allocation6 [shape = 's32[1]{0}', space=sflag, size = 0x4, scoped, tag = 'scoped memory for tpu_custom_call.1']
    #allocation7 [shape = 'u8[4096]{0}', space=vmem, size = 0x1000, scoped, tag = 'output window, operand 0, single buffered']
    %14 = vsyncpa [#allocation3], 0
    %15 = vsyncpa [#allocation6], 0
    %16 = vsyncpa [#allocation4], 0
    // Predicated region
    $region2: #{tpu_custom_call.1} parent=1 // pred_check
      _
    $region3: #{tpu_custom_call.1} parent=1 // pred_check_branch
      %18 = sbr.rel (0) target = $region5
    $region4: #{tpu_custom_call.1} parent=1 // pred_region
      _
    $region5: #{tpu_custom_call.1} parent=1 // pred_fallthru
      _
    // Predicated region
    $region6: #{tpu_custom_call.1} parent=1 // pred_check
      _
    $region7: #{tpu_custom_call.1} parent=1 // pred_check_branch
      %20 = sbr.rel (0) target = $region9
    $region8: #{tpu_custom_call.1} parent=1 // pred_region
      %s22 = ssub.s32 128, 128
      %23 = vsyncadd [#allocation3], %s22
      %s25 = sshll.u32 [#allocation2], 4
      %s26 = int_to_ptr.vmem [resolvable:$true] %s25
      %28 = dma.hbm_to_vmem [thread:$0]  %s1, 128, %s26, [#allocation3]
    $region9: #{tpu_custom_call.1} parent=1 // pred_fallthru
      _
    // Predicated region
    $region10: #{tpu_custom_call.1} parent=1 // pred_check
      _
    $region11: #{tpu_custom_call.1} parent=1 // pred_check_branch
      %30 = sbr.rel (0) target = $region13
    $region12: #{tpu_custom_call.1} parent=1 // pred_region
      _
    $region13: #{tpu_custom_call.1} parent=1 // pred_fallthru
      _
    // Predicated region
    $region14: #{tpu_custom_call.1} parent=1 // pred_check
      _
    $region15: #{tpu_custom_call.1} parent=1 // pred_check_branch
      %32 = sbr.rel (0) target = $region17
    $region16: #{tpu_custom_call.1} parent=1 // pred_region
      %s34 = ssub.s32 256, 256
      %35 = vsyncadd [#allocation6], %s34
      %s36 = sshll.u32 [#allocation5], 4
      %s37 = int_to_ptr.vmem [resolvable:$true] %s36
      %42 = dma.hbm_to_vmem [thread:$0]  %s3, 256, %s37, [#allocation6], 128, 128, 8
    $region17: #{tpu_custom_call.1} parent=1 // pred_fallthru
      _
    // Predicated region
    $region18: #{tpu_custom_call.1} parent=1 // pred_check
      _
    $region19: #{tpu_custom_call.1} parent=1 // pred_check_branch
      %44 = sbr.rel (0) target = $region21
    $region20: #{tpu_custom_call.1} parent=1 // pred_region
      _
    $region21: #{tpu_custom_call.1} parent=1 // pred_fallthru
      _
    // Predicated region
    $region22: #{tpu_custom_call.1} parent=1 // pred_check
      _
    $region23: #{tpu_custom_call.1} parent=1 // pred_check_branch
      %46 = sbr.rel (0) target = $region25
    $region24: #{tpu_custom_call.1} parent=1 // pred_region
      _
    $region25: #{tpu_custom_call.1} parent=1 // pred_fallthru
      _
    // Predicated region
    $region26: #{tpu_custom_call.1} parent=1 // pred_check
      _
    $region27: #{tpu_custom_call.1} parent=1 // pred_check_branch
      %48 = sbr.rel (0) target = $region29
    $region28: #{tpu_custom_call.1} parent=1 // pred_region
      _
    $region29: #{tpu_custom_call.1} parent=1 // pred_fallthru
      _
    // Predicated region
    $region30: #{tpu_custom_call.1} parent=1 // pred_check
      _
    $region31: #{tpu_custom_call.1} parent=1 // pred_check_branch
      %50 = sbr.rel (0) target = $region33
    $region32: #{tpu_custom_call.1} parent=1 // pred_region
      _
    $region33: #{tpu_custom_call.1} parent=1 // pred_fallthru
      _
    // Predicated region
    $region34: #{tpu_custom_call.1} parent=1 // pred_check
      _
    $region35: #{tpu_custom_call.1} parent=1 // pred_check_branch
      %52 = sbr.rel (0) target = $region37
    $region36: #{tpu_custom_call.1} parent=1 // pred_region
      _
    $region37: #{tpu_custom_call.1} parent=1 // pred_fallthru
      _
    // Predicated region
    $region38: #{tpu_custom_call.1} parent=1 // pred_check
      _
    $region39: #{tpu_custom_call.1} parent=1 // pred_check_branch
      %54 = sbr.rel (0) target = $region41
    $region40: #{tpu_custom_call.1} parent=1 // pred_region
      %55 = dma.done [#allocation3], 128
    $region41: #{tpu_custom_call.1} parent=1 // pred_fallthru
      _
    // Predicated region
    $region42: #{tpu_custom_call.1} parent=1 // pred_check
      _
    $region43: #{tpu_custom_call.1} parent=1 // pred_check_branch
      %57 = sbr.rel (0) target = $region45
    $region44: #{tpu_custom_call.1} parent=1 // pred_region
      %58 = dma.done [#allocation6], 256
    $region45: #{tpu_custom_call.1} parent=1 // pred_fallthru
      _
    %v59 = vld [vmem:[%s0] sm:$0xff]
    %v60 = vld [vmem:[#allocation2] sm:$0xff]
    %v61 = vld [vmem:[%s2] sm:$0xff]
    %v62 = vld [vmem:[%s2 + $0x8] sm:$0xff]
    %v63 = vld [vmem:[#allocation5] sm:$0xff]
    %v64 = vld [vmem:[#allocation5 + $0x8] sm:$0xff]
    %vm65 = vcmask 130048
    %v67 = vsel %vm65, %v60, 0
    %69 = vmatprep.subr.mxu0 0.0
    %70 = vmatpush1.msra.mxu0 0.0
    %71 = vmatprep.subr.mxu0 0.0
    %72 = vmatpush1.msra.mxu0 0.0
    %73 = vmatprep.subr.mxu0 0.0
    %74 = vmatpush1.msra.mxu0 0.0
    %75 = vmatprep.subr.mxu0 0.0
    %76 = vmatpush1.msra.mxu0 0.0
    %77 = vmatprep.subr.mxu0 0.0
    %78 = vmatpush1.msra.mxu0 0.0
    %79 = vmatprep.subr.mxu0 0.0
    %80 = vmatpush1.msra.mxu0 0.0
    %81 = vmatprep.subr.mxu0 0.0
    %82 = vmatpush1.msra.mxu0 0.0
    %83 = vmatprep.subr.mxu0 0.0
    %84 = vmatpush1.msra.mxu0 0.0
    %85 = vmatprep.subr.mxu0 0.0
    %86 = vmatpush1.msra.mxu0 0.0
    %87 = vmatprep.subr.mxu0 0.0
    %88 = vmatpush1.msra.mxu0 0.0
    %89 = vmatprep.subr.mxu0 0.0
    %90 = vmatpush1.msra.mxu0 0.0
    %91 = vmatprep.subr.mxu0 0.0
    %92 = vmatpush1.msra.mxu0 0.0
    %93 = vmatprep.subr.mxu0 0.0
    %94 = vmatpush1.msra.mxu0 0.0
    %95 = vmatprep.subr.mxu0 0.0
    %96 = vmatpush1.msra.mxu0 0.0
    %97 = vmatprep.subr.mxu0 0.0
    %98 = vmatpush1.msra.mxu0 %v64
    %99 = vmatprep.subr.mxu0 0.0
    %100 = vmatpush1.msra.mxu0 %v63
    %101 = vmatprep.subr.mxu0 0.0
    %102 = vmatpush2.msra.mxu0 0.0
    %103 = vmatprep.subr.mxu0 0.0
    %104 = vmatpush2.msra.mxu0 0.0
    %105 = vmatprep.subr.mxu0 0.0
    %106 = vmatpush2.msra.mxu0 0.0
    %107 = vmatprep.subr.mxu0 0.0
    %108 = vmatpush2.msra.mxu0 0.0
    %109 = vmatprep.subr.mxu0 0.0
    %110 = vmatpush2.msra.mxu0 0.0
    %111 = vmatprep.subr.mxu0 0.0
    %112 = vmatpush2.msra.mxu0 0.0
    %113 = vmatprep.subr.mxu0 0.0
    %114 = vmatpush2.msra.mxu0 0.0
    %115 = vmatprep.subr.mxu0 0.0
    %116 = vmatpush2.msra.mxu0 0.0
    %117 = vmatprep.subr.mxu0 0.0
    %118 = vmatpush2.msra.mxu0 0.0
    %119 = vmatprep.subr.mxu0 0.0
    %120 = vmatpush2.msra.mxu0 0.0
    %121 = vmatprep.subr.mxu0 0.0
    %122 = vmatpush2.msra.mxu0 0.0
    %123 = vmatprep.subr.mxu0 0.0
    %124 = vmatpush2.msra.mxu0 0.0
    %125 = vmatprep.subr.mxu0 0.0
    %126 = vmatpush2.msra.mxu0 0.0
    %127 = vmatprep.subr.mxu0 0.0
    %128 = vmatpush2.msra.mxu0 0.0
    %129 = vmatprep.subr.mxu0 0.0
    %130 = vmatpush2.msra.mxu0 0.0
    %131 = vmatprep.subr.mxu0 0.0
    %132 = vmatpush2.msra.mxu0 0.0
    %133 = vmatprep.mubr.f32.mxu0 0.0
    %134 = vmatmul.mubr.f32.gmra.mxu0 %v67
    %v135 = vpop.f32.mrf.mxu0
    %v136 = vadd.f32 0.0, %v135
    %v137 = vpop.f32.mrf.mxu0
    %138 = vdwg.mxu0
    %v140 = vsel %vm65, %v59, 0
    %142 = vmatprep.subr.mxu0 0.0
    %143 = vmatpush1.msra.mxu0 0.0
    %144 = vmatprep.subr.mxu0 0.0
    %145 = vmatpush1.msra.mxu0 0.0
    %146 = vmatprep.subr.mxu0 0.0
    %147 = vmatpush1.msra.mxu0 0.0
    %148 = vmatprep.subr.mxu0 0.0
    %149 = vmatpush1.msra.mxu0 0.0
    %150 = vmatprep.subr.mxu0 0.0
    %151 = vmatpush1.msra.mxu0 0.0
    %152 = vmatprep.subr.mxu0 0.0
    %153 = vmatpush1.msra.mxu0 0.0
    %154 = vmatprep.subr.mxu0 0.0
    %155 = vmatpush1.msra.mxu0 0.0
    %156 = vmatprep.subr.mxu0 0.0
    %157 = vmatpush1.msra.mxu0 0.0
    %158 = vmatprep.subr.mxu0 0.0
    %159 = vmatpush1.msra.mxu0 0.0
    %160 = vmatprep.subr.mxu0 0.0
    %161 = vmatpush1.msra.mxu0 0.0
    %162 = vmatprep.subr.mxu0 0.0
    %163 = vmatpush1.msra.mxu0 0.0
    %164 = vmatprep.subr.mxu0 0.0
    %165 = vmatpush1.msra.mxu0 0.0
    %166 = vmatprep.subr.mxu0 0.0
    %167 = vmatpush1.msra.mxu0 0.0
    %168 = vmatprep.subr.mxu0 0.0
    %169 = vmatpush1.msra.mxu0 0.0
    %170 = vmatprep.subr.mxu0 0.0
    %171 = vmatpush1.msra.mxu0 %v62
    %172 = vmatprep.subr.mxu0 0.0
    %173 = vmatpush1.msra.mxu0 %v61
    %174 = vmatprep.subr.mxu0 0.0
    %175 = vmatpush2.msra.mxu0 0.0
    %176 = vmatprep.subr.mxu0 0.0
    %177 = vmatpush2.msra.mxu0 0.0
    %178 = vmatprep.subr.mxu0 0.0
    %179 = vmatpush2.msra.mxu0 0.0
    %180 = vmatprep.subr.mxu0 0.0
    %181 = vmatpush2.msra.mxu0 0.0
    %182 = vmatprep.subr.mxu0 0.0
    %183 = vmatpush2.msra.mxu0 0.0
    %184 = vmatprep.subr.mxu0 0.0
    %185 = vmatpush2.msra.mxu0 0.0
    %186 = vmatprep.subr.mxu0 0.0
    %187 = vmatpush2.msra.mxu0 0.0
    %188 = vmatprep.subr.mxu0 0.0
    %189 = vmatpush2.msra.mxu0 0.0
    %190 = vmatprep.subr.mxu0 0.0
    %191 = vmatpush2.msra.mxu0 0.0
    %192 = vmatprep.subr.mxu0 0.0
    %193 = vmatpush2.msra.mxu0 0.0
    %194 = vmatprep.subr.mxu0 0.0
    %195 = vmatpush2.msra.mxu0 0.0
    %196 = vmatprep.subr.mxu0 0.0
    %197 = vmatpush2.msra.mxu0 0.0
    %198 = vmatprep.subr.mxu0 0.0
    %199 = vmatpush2.msra.mxu0 0.0
    %200 = vmatprep.subr.mxu0 0.0
    %201 = vmatpush2.msra.mxu0 0.0
    %202 = vmatprep.subr.mxu0 0.0
    %203 = vmatpush2.msra.mxu0 0.0
    %204 = vmatprep.subr.mxu0 0.0
    %205 = vmatpush2.msra.mxu0 0.0
    %206 = vmatprep.mubr.f32.mxu0 0.0
    %207 = vmatmul.mubr.f32.gmra.mxu0 %v140
    %v208 = vpop.f32.mrf.mxu0
    %v209 = vadd.f32 %v136, %v208
    %v210 = vpop.f32.mrf.mxu0
    %211 = vdwg.mxu0
    %v212 = vld [vmem:[%s4] sm:$0x1]
    %v214 = vlaneseq
    %v215 = vshrl.u32 %v214, 7
    %v216 = vsub.s32 0, %v215
    %v217 = vrot.slane %v212, %v216
    %v219 = vadd.f32 %v209, %v217
    %v220 = vmax.f32 %v219, 0.0
    %v221 = vld [vmem:[%s5] sm:$0xff]
    %v222 = vld [vmem:[%s5 + $0x8] sm:$0xff]
    %v223 = vld [vmem:[%s5 + $0x10] sm:$0xff]
    %v224 = vld [vmem:[%s5 + $0x18] sm:$0xff]
    %v225 = vld [vmem:[%s5 + $0x20] sm:$0xff]
    %v226 = vld [vmem:[%s5 + $0x28] sm:$0xff]
    %v227 = vld [vmem:[%s5 + $0x30] sm:$0xff]
    %v228 = vld [vmem:[%s5 + $0x38] sm:$0xff]
    %v229 = vld [vmem:[%s5 + $0x40] sm:$0xff]
    %v230 = vld [vmem:[%s5 + $0x48] sm:$0xff]
    %v231 = vld [vmem:[%s5 + $0x50] sm:$0xff]
    %v232 = vld [vmem:[%s5 + $0x58] sm:$0xff]
    %v233 = vld [vmem:[%s5 + $0x60] sm:$0xff]
    %v234 = vld [vmem:[%s5 + $0x68] sm:$0xff]
    %v235 = vld [vmem:[%s5 + $0x70] sm:$0xff]
    %v236 = vld [vmem:[%s5 + $0x78] sm:$0xff]
    %v237 = vld [vmem:[%s6] sm:$0x1]
    %v239 = vlaneseq
    %v240 = vshrl.u32 %v239, 7
    %v241 = vsub.s32 0, %v240
    %v242 = vrot.slane %v237, %v241
    %244 = vmatprep.subr.mxu0 0.0
    %245 = vmatpush1.msra.mxu0 %v236
    %246 = vmatprep.subr.mxu0 0.0
    %247 = vmatpush1.msra.mxu0 %v235
    %248 = vmatprep.subr.mxu0 0.0
    %249 = vmatpush1.msra.mxu0 %v234
    %250 = vmatprep.subr.mxu0 0.0
    %251 = vmatpush1.msra.mxu0 %v233
    %252 = vmatprep.subr.mxu0 0.0
    %253 = vmatpush1.msra.mxu0 %v232
    %254 = vmatprep.subr.mxu0 0.0
    %255 = vmatpush1.msra.mxu0 %v231
    %256 = vmatprep.subr.mxu0 0.0
    %257 = vmatpush1.msra.mxu0 %v230
    %258 = vmatprep.subr.mxu0 0.0
    %259 = vmatpush1.msra.mxu0 %v229
    %260 = vmatprep.subr.mxu0 0.0
    %261 = vmatpush1.msra.mxu0 %v228
    %262 = vmatprep.subr.mxu0 0.0
    %263 = vmatpush1.msra.mxu0 %v227
    %264 = vmatprep.subr.mxu0 0.0
    %265 = vmatpush1.msra.mxu0 %v226
    %266 = vmatprep.subr.mxu0 0.0
    %267 = vmatpush1.msra.mxu0 %v225
    %268 = vmatprep.subr.mxu0 0.0
    %269 = vmatpush1.msra.mxu0 %v224
    %270 = vmatprep.subr.mxu0 0.0
    %271 = vmatpush1.msra.mxu0 %v223
    %272 = vmatprep.subr.mxu0 0.0
    %273 = vmatpush1.msra.mxu0 %v222
    %274 = vmatprep.subr.mxu0 0.0
    %275 = vmatpush1.msra.mxu0 %v221
    %276 = vmatprep.subr.mxu0 0.0
    %277 = vmatpush2.msra.mxu0 0.0
    %278 = vmatprep.subr.mxu0 0.0
    %279 = vmatpush2.msra.mxu0 0.0
    %280 = vmatprep.subr.mxu0 0.0
    %281 = vmatpush2.msra.mxu0 0.0
    %282 = vmatprep.subr.mxu0 0.0
    %283 = vmatpush2.msra.mxu0 0.0
    %284 = vmatprep.subr.mxu0 0.0
    %285 = vmatpush2.msra.mxu0 0.0
    %286 = vmatprep.subr.mxu0 0.0
    %287 = vmatpush2.msra.mxu0 0.0
    %288 = vmatprep.subr.mxu0 0.0
    %289 = vmatpush2.msra.mxu0 0.0
    %290 = vmatprep.subr.mxu0 0.0
    %291 = vmatpush2.msra.mxu0 0.0
    %292 = vmatprep.subr.mxu0 0.0
    %293 = vmatpush2.msra.mxu0 0.0
    %294 = vmatprep.subr.mxu0 0.0
    %295 = vmatpush2.msra.mxu0 0.0
    %296 = vmatprep.subr.mxu0 0.0
    %297 = vmatpush2.msra.mxu0 0.0
    %298 = vmatprep.subr.mxu0 0.0
    %299 = vmatpush2.msra.mxu0 0.0
    %300 = vmatprep.subr.mxu0 0.0
    %301 = vmatpush2.msra.mxu0 0.0
    %302 = vmatprep.subr.mxu0 0.0
    %303 = vmatpush2.msra.mxu0 0.0
    %304 = vmatprep.subr.mxu0 0.0
    %305 = vmatpush2.msra.mxu0 0.0
    %306 = vmatprep.subr.mxu0 0.0
    %307 = vmatpush2.msra.mxu0 0.0
    %308 = vmatprep.mubr.f32.mxu0 0.0
    %309 = vmatmul.mubr.f32.gmra.mxu0 %v220
    %v310 = vpop.f32.mrf.mxu0
    %v311 = vadd.f32 %v242, %v310
    %v312 = vpop.f32.mrf.mxu0
    %313 = vdwg.mxu0
    %v314 = vmax.f32 %v311, 0.0
    %v315 = vld [vmem:[%s7] sm:$0xff]
    %v316 = vld [vmem:[%s7 + $0x8] sm:$0xff]
    %v317 = vld [vmem:[%s7 + $0x10] sm:$0xff]
    %v318 = vld [vmem:[%s7 + $0x18] sm:$0xff]
    %v319 = vld [vmem:[%s7 + $0x20] sm:$0xff]
    %v320 = vld [vmem:[%s7 + $0x28] sm:$0xff]
    %v321 = vld [vmem:[%s7 + $0x30] sm:$0xff]
    %v322 = vld [vmem:[%s7 + $0x38] sm:$0xff]
    %v323 = vld [vmem:[%s7 + $0x40] sm:$0xff]
    %v324 = vld [vmem:[%s7 + $0x48] sm:$0xff]
    %v325 = vld [vmem:[%s7 + $0x50] sm:$0xff]
    %v326 = vld [vmem:[%s7 + $0x58] sm:$0xff]
    %v327 = vld [vmem:[%s7 + $0x60] sm:$0xff]
    %v328 = vld [vmem:[%s7 + $0x68] sm:$0xff]
    %v329 = vld [vmem:[%s7 + $0x70] sm:$0xff]
    %v330 = vld [vmem:[%s7 + $0x78] sm:$0xff]
    %v331 = vld [vmem:[%s8] sm:$0x1]
    %v333 = vlaneseq
    %v334 = vshrl.u32 %v333, 7
    %v335 = vsub.s32 0, %v334
    %v336 = vrot.slane %v331, %v335
    %338 = vmatprep.subr.mxu0 0.0
    %339 = vmatpush1.msra.mxu0 %v330
    %340 = vmatprep.subr.mxu0 0.0
    %341 = vmatpush1.msra.mxu0 %v329
    %342 = vmatprep.subr.mxu0 0.0
    %343 = vmatpush1.msra.mxu0 %v328
    %344 = vmatprep.subr.mxu0 0.0
    %345 = vmatpush1.msra.mxu0 %v327
    %346 = vmatprep.subr.mxu0 0.0
    %347 = vmatpush1.msra.mxu0 %v326
    %348 = vmatprep.subr.mxu0 0.0
    %349 = vmatpush1.msra.mxu0 %v325
    %350 = vmatprep.subr.mxu0 0.0
    %351 = vmatpush1.msra.mxu0 %v324
    %352 = vmatprep.subr.mxu0 0.0
    %353 = vmatpush1.msra.mxu0 %v323
    %354 = vmatprep.subr.mxu0 0.0
    %355 = vmatpush1.msra.mxu0 %v322
    %356 = vmatprep.subr.mxu0 0.0
    %357 = vmatpush1.msra.mxu0 %v321
    %358 = vmatprep.subr.mxu0 0.0
    %359 = vmatpush1.msra.mxu0 %v320
    %360 = vmatprep.subr.mxu0 0.0
    %361 = vmatpush1.msra.mxu0 %v319
    %362 = vmatprep.subr.mxu0 0.0
    %363 = vmatpush1.msra.mxu0 %v318
    %364 = vmatprep.subr.mxu0 0.0
    %365 = vmatpush1.msra.mxu0 %v317
    %366 = vmatprep.subr.mxu0 0.0
    %367 = vmatpush1.msra.mxu0 %v316
    %368 = vmatprep.subr.mxu0 0.0
    %369 = vmatpush1.msra.mxu0 %v315
    %370 = vmatprep.subr.mxu0 0.0
    %371 = vmatpush2.msra.mxu0 0.0
    %372 = vmatprep.subr.mxu0 0.0
    %373 = vmatpush2.msra.mxu0 0.0
    %374 = vmatprep.subr.mxu0 0.0
    %375 = vmatpush2.msra.mxu0 0.0
    %376 = vmatprep.subr.mxu0 0.0
    %377 = vmatpush2.msra.mxu0 0.0
    %378 = vmatprep.subr.mxu0 0.0
    %379 = vmatpush2.msra.mxu0 0.0
    %380 = vmatprep.subr.mxu0 0.0
    %381 = vmatpush2.msra.mxu0 0.0
    %382 = vmatprep.subr.mxu0 0.0
    %383 = vmatpush2.msra.mxu0 0.0
    %384 = vmatprep.subr.mxu0 0.0
    %385 = vmatpush2.msra.mxu0 0.0
    %386 = vmatprep.subr.mxu0 0.0
    %387 = vmatpush2.msra.mxu0 0.0
    %388 = vmatprep.subr.mxu0 0.0
    %389 = vmatpush2.msra.mxu0 0.0
    %390 = vmatprep.subr.mxu0 0.0
    %391 = vmatpush2.msra.mxu0 0.0
    %392 = vmatprep.subr.mxu0 0.0
    %393 = vmatpush2.msra.mxu0 0.0
    %394 = vmatprep.subr.mxu0 0.0
    %395 = vmatpush2.msra.mxu0 0.0
    %396 = vmatprep.subr.mxu0 0.0
    %397 = vmatpush2.msra.mxu0 0.0
    %398 = vmatprep.subr.mxu0 0.0
    %399 = vmatpush2.msra.mxu0 0.0
    %400 = vmatprep.subr.mxu0 0.0
    %401 = vmatpush2.msra.mxu0 0.0
    %402 = vmatprep.mubr.f32.mxu0 0.0
    %403 = vmatmul.mubr.f32.gmra.mxu0 %v314
    %v404 = vpop.f32.mrf.mxu0
    %v405 = vadd.f32 %v336, %v404
    %v406 = vpop.f32.mrf.mxu0
    %407 = vdwg.mxu0
    %408 = vst.msk [vmem:[#allocation7] sm:$0xff] %vm65, %v405
    // Predicated region
    $region46: #{tpu_custom_call.1} parent=1 // pred_check
      _
    $region47: #{tpu_custom_call.1} parent=1 // pred_check_branch
      %410 = sbr.rel (0) target = $region49
    $region48: #{tpu_custom_call.1} parent=1 // pred_region
      %s412 = ssub.s32 128, 128
      %413 = vsyncadd [#allocation4], %s412
      %s415 = sshll.u32 [#allocation7], 4
      %s416 = int_to_ptr.vmem [resolvable:$true] %s415
      %418 = dma.vmem_to_hbm [thread:$0]  %s416, 128, %s9, [#allocation4]
    $region49: #{tpu_custom_call.1} parent=1 // pred_fallthru
      _
    // Predicated region
    $region50: #{tpu_custom_call.1} parent=1 // pred_check
      _
    $region51: #{tpu_custom_call.1} parent=1 // pred_check_branch
      %420 = sbr.rel (0) target = $region53
    $region52: #{tpu_custom_call.1} parent=1 // pred_region
      %421 = dma.done [#allocation4], 128
    $region53: #{tpu_custom_call.1} parent=1 // pred_fallthru
      _
    %422 = vsyncpa [#allocation3], 1
    %423 = vsyncpa [#allocation6], 1
    %424 = vsyncpa [#allocation4], 1

</llo_original>
